<compile_context>
chip_gen: v5e
topology: v5e:2x2
jax: 0.10.0
libtpu: 0.0.40
codegen_flags: <defaults>
</compile_context>

<pallas_src>
import functools

import numpy as np
import jax
import jax.numpy as jnp
from jax.experimental import pallas as pl
from jax.experimental.pallas import tpu as pltpu


def _cdiv(a, b):
    return (a + b - 1) // b


def _round_up(a, b):
    return _cdiv(a, b) * b


def _decompose_hierarchy(hierarchy_matrix):
    """Split a 0/1 hierarchy matrix H (rows=parents, cols=children) into
    column-one-hot slices H_k plus per-slice child masks so that
        sum_i H[i,j] * relu(p_j - p_i) == sum_k mask_k[j] * relu(p_j - (p @ H_k)[:, j])
    holds exactly for any DAG (k = max in-degree).  H is a module constant, so this
    runs host-side once (static preprocessing, never traced)."""
    h = np.asarray(jax.device_get(hierarchy_matrix), dtype=np.float32)
    n = h.shape[0]
    k_max = max(int((h > 0.5).sum(axis=0).max()) if n > 0 else 0, 1)
    slices = np.zeros((k_max, n, n), dtype=np.float32)
    masks = np.zeros((k_max, n), dtype=np.float32)
    for j in range(n):
        parents = np.nonzero(h[:, j] > 0.5)[0]
        for k, i in enumerate(parents):
            slices[k, i, j] = 1.0
            masks[k, j] = 1.0
    return slices, masks


def hierarchical_loss_kernel(x_ref, t_ref, w_ref, m_ref, h_ref, out_ref, acc_ref,
                             *, alpha, beta, batch, block_b, num_slices):
    s = pl.program_id(0)           # shard axis ("parallel")
    b = pl.program_id(1)           # batch-tile axis ("arbitrary", accumulated)
    nb = pl.num_programs(1)

    @pl.when(b == 0)
    def _init():
        acc_ref[...] = jnp.zeros_like(acc_ref)

    x = x_ref[...].astype(jnp.float32)            # (TB, N) logits
    t = t_ref[...].astype(jnp.float32)            # (TB, N) targets
    w = w_ref[...].astype(jnp.float32)            # (1, N)  per-node level weights

    # Row-validity mask: batch was padded to num_shards * nb * block_b rows.
    row0 = (s * nb + b) * block_b
    rows = jax.lax.broadcasted_iota(jnp.int32, x.shape, 0) + row0
    valid = (rows < batch).astype(jnp.float32)    # (TB, N)

    # Stable BCE-with-logits and sigmoid, sharing a single exp (EUP).
    e = jnp.exp(-jnp.abs(x))
    bce = jnp.maximum(x, 0.0) - x * t + jnp.log1p(e)
    r = 1.0 / (1.0 + e)
    probs = jnp.where(x >= 0.0, r, e * r)

    # consistency[:, j] = sum_i H[i,j] * relu(p[:,j] - p[:,i])
    # via column-one-hot slices of H driven through the MXU (exact parent pick).
    cons = jnp.zeros_like(probs)
    for k in range(num_slices):                     # num_slices = max in-degree
        hk = h_ref[k].astype(jnp.float32)           # (N, N), 0/1 (bf16 -> exact)
        mk = m_ref[k:k + 1, :].astype(jnp.float32)  # (1, N) "has k-th parent" mask
        parent = jnp.dot(probs, hk,
                         precision=jax.lax.Precision.HIGHEST,
                         preferred_element_type=jnp.float32)  # (TB, N)
        cons = cons + mk * jnp.maximum(probs - parent, 0.0)

    bce = bce * valid
    cons = cons * valid

    # Level weights applied after the batch (sublane) reduction.
    bce_col = jnp.sum(bce, axis=0, keepdims=True)      # (1, N)
    cons_col = jnp.sum(cons, axis=0, keepdims=True)    # (1, N)
    sw = jnp.sum(bce_col * w, axis=1, keepdims=True)   # (1, 1)
    sc = jnp.sum(cons_col, axis=1, keepdims=True)      # (1, 1)
    acc_ref[...] += alpha * sw + beta * sc

    @pl.when(b == nb - 1)
    def _finalize():
        # Lane-dense write (full (8,128) vreg) of this shard's partial sum.
        out_ref[...] = jnp.broadcast_to(acc_ref[...], out_ref.shape)


def hierarchical_loss(outputs, targets, node_weights, hierarchy_matrix,
                      alpha=1.0, beta=0.5, block_b=256, num_shards=2):
    """outputs/targets: (B, N) (any float dtype); node_weights: (N,);
    hierarchy_matrix: (N, N) 0/1 constant (decomposed host-side)."""
    b, n = outputs.shape
    w = jnp.asarray(node_weights, jnp.float32).reshape(1, n)

    # Static host-side decomposition of the (constant) hierarchy matrix.
    h_slices_np, h_masks_np = _decompose_hierarchy(hierarchy_matrix)
    num_slices = h_slices_np.shape[0]
    h_slices = jnp.asarray(h_slices_np, dtype=jnp.bfloat16)   # 0/1 exact in bf16
    h_masks = jnp.asarray(h_masks_np, dtype=jnp.float32)

    # Batch tiling: sublane block must be a multiple of 8.
    # block_b=256 keeps double-buffered input tiles comfortably inside the default
    # scoped-VMEM budget on v5e/v6e/v7x even for wide N.
    tb = _round_up(min(block_b, max(b, 1)), 8)
    num_shards = max(1, min(num_shards, _cdiv(b, tb)))
    steps = _cdiv(b, num_shards * tb)
    b_pad = steps * num_shards * tb
    if b_pad != b:
        pad = b_pad - b
        outputs = jnp.pad(outputs, ((0, pad), (0, 0)))
        targets = jnp.pad(targets, ((0, pad), (0, 0)))

    kernel = functools.partial(
        hierarchical_loss_kernel,
        alpha=float(alpha), beta=float(beta),
        batch=int(b), block_b=int(tb), num_slices=int(num_slices))

    out = pl.pallas_call(
        kernel,
        out_shape=jax.ShapeDtypeStruct((num_shards, 8, 128), jnp.float32),
        grid_spec=pltpu.PrefetchScalarGridSpec(
            num_scalar_prefetch=0,
            grid=(num_shards, steps),
            in_specs=[
                pl.BlockSpec((tb, n), lambda s, bb: (s * steps + bb, 0)),   # outputs
                pl.BlockSpec((tb, n), lambda s, bb: (s * steps + bb, 0)),   # targets
                pl.BlockSpec((1, n), lambda s, bb: (0, 0)),                 # level weights
                pl.BlockSpec((num_slices, n), lambda s, bb: (0, 0)),        # parent masks
                pl.BlockSpec((num_slices, n, n), lambda s, bb: (0, 0, 0)),  # H slices (resident)
            ],
            out_specs=pl.BlockSpec((1, 8, 128), lambda s, bb: (s, 0, 0)),
            scratch_shapes=[pltpu.VMEM((1, 1), jnp.float32)],
        ),
        compiler_params=pltpu.CompilerParams(
            dimension_semantics=("parallel", "arbitrary")),
    )(outputs, targets, w, h_masks, h_slices)

    total = jnp.sum(out[:, 0, 0])            # reduce per-shard partial sums
    return total / jnp.float32(b * n)


def _reference_loss(x, t, w, h, alpha=1.0, beta=0.5):
    """Pure-JAX reference mirroring the PyTorch forward (for verification)."""
    x = x.astype(jnp.float32)
    t = t.astype(jnp.float32)
    bce = jnp.maximum(x, 0.0) - x * t + jnp.log1p(jnp.exp(-jnp.abs(x)))
    wbce = bce * w[None, :]
    p = jax.nn.sigmoid(x)
    diff = jnp.maximum(p[:, None, :] - p[:, :, None], 0.0)   # (B, i, j)
    cons = jnp.sum(diff * h[None, :, :], axis=1)             # (B, N)
    return alpha * wbce.mean() + beta * cons.mean()


if __name__ == "__main__":
    B, N = 2, 16
    alpha, beta = 1.0, 0.5

    key = jax.random.PRNGKey(0)
    k_out, k_tgt = jax.random.split(key)
    outputs = jax.random.normal(k_out, (B, N), dtype=jnp.float32)
    targets = jax.random.bernoulli(k_tgt, 0.5, (B, N)).astype(jnp.float32)

    # Deterministic synthetic hierarchy: node i is a parent of nodes i+1 and i+2
    # (multi-parent DAG -> exercises the 2-slice decomposition).
    ii = jnp.arange(N)[:, None]
    jj = jnp.arange(N)[None, :]
    hierarchy_matrix = (((jj - ii) >= 1) & ((jj - ii) <= 2)).astype(jnp.float32)

    # node_levels dict (index -> level name) resolved host-side into per-node weights,
    # exactly as the PyTorch forward's per-column lookup does.
    level_names = ["Group", "Superclass", "Class", "Subclass", "Part"]
    level_weights = {"Group": 1.0, "Superclass": 0.9, "Class": 0.8,
                     "Subclass": 0.7, "Part": 0.6}
    node_levels = {i: level_names[i % len(level_names)] for i in range(N)}
    node_weights = jnp.array(
        [level_weights[node_levels.get(i, "Part")] for i in range(N)],
        dtype=jnp.float32)

    loss = hierarchical_loss(outputs, targets, node_weights, hierarchy_matrix,
                             alpha=alpha, beta=beta)
    loss = jax.block_until_ready(loss)

    ref = _reference_loss(outputs, targets, node_weights, hierarchy_matrix,
                          alpha=alpha, beta=beta)
    assert jnp.allclose(loss, ref, rtol=1e-4, atol=1e-5), (loss, ref)

    print("KERNEL_OK")
</pallas_src>

<mosaic_0001>
module attributes {stable_mosaic.version = 11 : i64} {
  func.func @hierarchical_loss_kernel(%arg0: i32, %arg1: i32, %arg2: memref<8x16xf32, #tpu.memory_space<vmem>>, %arg3: memref<8x16xf32, #tpu.memory_space<vmem>>, %arg4: memref<1x16xf32, #tpu.memory_space<vmem>>, %arg5: memref<2x16xf32, #tpu.memory_space<vmem>>, %arg6: memref<2x16x16xbf16, #tpu.memory_space<vmem>>, %arg7: memref<1x8x128xf32, #tpu.memory_space<vmem>>, %arg8: memref<1x1xf32, #tpu.memory_space<vmem>>) attributes {dimension_semantics = [#tpu.dimension_semantics<parallel>, #tpu.dimension_semantics<arbitrary>], iteration_bounds = array<i64: 1, 1>, scalar_prefetch = 0 : i64, scratch_operands = 1 : i64, tpu.core_type = #tpu.core_type<tc>, window_params = [{transform_indices = @transform_0, window_bounds = array<i64: 8, 16>}, {transform_indices = @transform_1, window_bounds = array<i64: 8, 16>}, {pipeline_mode = #tpu.pipeline_mode<synchronous>, transform_indices = @transform_2, window_bounds = array<i64: 1, 16>}, {pipeline_mode = #tpu.pipeline_mode<synchronous>, transform_indices = @transform_3, window_bounds = array<i64: 2, 16>}, {pipeline_mode = #tpu.pipeline_mode<synchronous>, transform_indices = @transform_4, window_bounds = array<i64: 2, 16, 16>}, {transform_indices = @transform_5, window_bounds = array<i64: 1, 8, 128>}]} {
    %c0_i32 = arith.constant 0 : i32
    %0 = arith.cmpi eq, %arg1, %c0_i32 : i32
    %1 = arith.extui %0 : i1 to i32
    %c0_i32_0 = arith.constant 0 : i32
    %2 = arith.cmpi ne, %1, %c0_i32_0 : i32
    scf.if %2 {
      %cst_36 = arith.constant 0.000000e+00 : f32
      %79 = vector.broadcast %cst_36 : f32 to vector<1x1xf32>
      %c0_37 = arith.constant 0 : index
      %c0_38 = arith.constant 0 : index
      %80 = vector.load %arg8[%c0_37, %c0_38] : memref<1x1xf32, #tpu.memory_space<vmem>>, vector<1x1xf32>
      tpu.vector_store %arg8[%c0_37, %c0_38], %79 {strides = array<i32>} : memref<1x1xf32, #tpu.memory_space<vmem>>, vector<1x1xf32>,
    } else {
    }
    %c0 = arith.constant 0 : index
    %c0_1 = arith.constant 0 : index
    %3 = vector.load %arg2[%c0, %c0_1] : memref<8x16xf32, #tpu.memory_space<vmem>>, vector<8x16xf32>
    %c0_2 = arith.constant 0 : index
    %c0_3 = arith.constant 0 : index
    %4 = vector.load %arg3[%c0_2, %c0_3] : memref<8x16xf32, #tpu.memory_space<vmem>>, vector<8x16xf32>
    %c0_4 = arith.constant 0 : index
    %c0_5 = arith.constant 0 : index
    %5 = vector.load %arg4[%c0_4, %c0_5] : memref<1x16xf32, #tpu.memory_space<vmem>>, vector<1x16xf32>
    %c1_i32 = arith.constant 1 : i32
    %6 = arith.muli %arg0, %c1_i32 : i32
    %7 = arith.addi %6, %arg1 : i32
    %c8_i32 = arith.constant 8 : i32
    %8 = arith.muli %7, %c8_i32 : i32
    %9 = tpu.iota {dimensions = array<i32: 0>} : vector<8x16xi32>
    %10 = vector.broadcast %8 : i32 to vector<8x16xi32>
    %11 = arith.addi %9, %10 : vector<8x16xi32>
    %c2_i32 = arith.constant 2 : i32
    %12 = vector.broadcast %c2_i32 : i32 to vector<8x16xi32>
    %13 = arith.cmpi slt, %11, %12 : vector<8x16xi32>
    %14 = arith.extui %13 : vector<8x16xi1> to vector<8x16xi32>
    %15 = arith.sitofp %14 : vector<8x16xi32> to vector<8x16xf32>
    %16 = math.absf %3 : vector<8x16xf32>
    %cst = arith.constant 0.000000e+00 : f32
    %17 = vector.broadcast %cst : f32 to vector<8x16xf32>
    %18 = arith.subf %17, %16 : vector<8x16xf32>
    %19 = math.exp %18 : vector<8x16xf32>
    %cst_6 = arith.constant 0.000000e+00 : f32
    %20 = vector.broadcast %cst_6 : f32 to vector<8x16xf32>
    %21 = arith.maximumf %3, %20 : vector<8x16xf32>
    %22 = arith.mulf %3, %4 : vector<8x16xf32>
    %23 = arith.subf %21, %22 : vector<8x16xf32>
    %24 = math.log1p %19 : vector<8x16xf32>
    %25 = arith.addf %23, %24 : vector<8x16xf32>
    %cst_7 = arith.constant 1.000000e+00 : f32
    %26 = vector.broadcast %cst_7 : f32 to vector<8x16xf32>
    %27 = arith.addf %26, %19 : vector<8x16xf32>
    %cst_8 = arith.constant 1.000000e+00 : f32
    %28 = vector.broadcast %cst_8 : f32 to vector<8x16xf32>
    %29 = arith.divf %28, %27 : vector<8x16xf32>
    %cst_9 = arith.constant 0.000000e+00 : f32
    %30 = vector.broadcast %cst_9 : f32 to vector<8x16xf32>
    %31 = arith.cmpf oge, %3, %30 : vector<8x16xf32>
    %32 = arith.mulf %19, %29 : vector<8x16xf32>
    %33 = arith.select %31, %29, %32 : vector<8x16xi1>, vector<8x16xf32>
    %cst_10 = arith.constant 0.000000e+00 : f32
    %34 = vector.broadcast %cst_10 : f32 to vector<8x16xf32>
    %c0_11 = arith.constant 0 : index
    %c0_12 = arith.constant 0 : index
    %c0_13 = arith.constant 0 : index
    %35 = vector.load %arg6[%c0_11, %c0_12, %c0_13] : memref<2x16x16xbf16, #tpu.memory_space<vmem>>, vector<1x16x16xbf16>
    %36 = vector.shape_cast %35 : vector<1x16x16xbf16> to vector<16x16xbf16>
    %37 = arith.extf %36 : vector<16x16xbf16> to vector<16x16xf32>
    %c0_14 = arith.constant 0 : index
    %c0_15 = arith.constant 0 : index
    %38 = vector.load %arg5[%c0_14, %c0_15] : memref<2x16xf32, #tpu.memory_space<vmem>>, vector<1x16xf32>
    %cst_16 = arith.constant dense<0.000000e+00> : vector<8x16xf32>
    %39 = tpu.matmul %33, %37, %cst_16 {dimension_numbers = #tpu.dot_dimension_numbers<[1], [0], [0], [1], [0, 0, 1, 1], [], []>, precision = #tpu.contract_precision<fp32>} : vector<8x16xf32>, vector<16x16xf32>, vector<8x16xf32> -> vector<8x16xf32>
    %40 = arith.subf %33, %39 : vector<8x16xf32>
    %cst_17 = arith.constant 0.000000e+00 : f32
    %41 = vector.broadcast %cst_17 : f32 to vector<8x16xf32>
    %42 = arith.maximumf %40, %41 : vector<8x16xf32>
    %43 = vector.broadcast %38 : vector<1x16xf32> to vector<8x16xf32>
    %44 = arith.mulf %43, %42 : vector<8x16xf32>
    %45 = arith.addf %34, %44 : vector<8x16xf32>
    %c1 = arith.constant 1 : index
    %c0_18 = arith.constant 0 : index
    %c0_19 = arith.constant 0 : index
    %46 = vector.load %arg6[%c1, %c0_18, %c0_19] : memref<2x16x16xbf16, #tpu.memory_space<vmem>>, vector<1x16x16xbf16>
    %47 = vector.shape_cast %46 : vector<1x16x16xbf16> to vector<16x16xbf16>
    %48 = arith.extf %47 : vector<16x16xbf16> to vector<16x16xf32>
    %c1_20 = arith.constant 1 : index
    %c0_21 = arith.constant 0 : index
    %49 = vector.load %arg5[%c1_20, %c0_21] : memref<2x16xf32, #tpu.memory_space<vmem>>, vector<1x16xf32>
    %cst_22 = arith.constant dense<0.000000e+00> : vector<8x16xf32>
    %50 = tpu.matmul %33, %48, %cst_22 {dimension_numbers = #tpu.dot_dimension_numbers<[1], [0], [0], [1], [0, 0, 1, 1], [], []>, precision = #tpu.contract_precision<fp32>} : vector<8x16xf32>, vector<16x16xf32>, vector<8x16xf32> -> vector<8x16xf32>
    %51 = arith.subf %33, %50 : vector<8x16xf32>
    %cst_23 = arith.constant 0.000000e+00 : f32
    %52 = vector.broadcast %cst_23 : f32 to vector<8x16xf32>
    %53 = arith.maximumf %51, %52 : vector<8x16xf32>
    %54 = vector.broadcast %49 : vector<1x16xf32> to vector<8x16xf32>
    %55 = arith.mulf %54, %53 : vector<8x16xf32>
    %56 = arith.addf %45, %55 : vector<8x16xf32>
    %57 = arith.mulf %25, %15 : vector<8x16xf32>
    %58 = arith.mulf %56, %15 : vector<8x16xf32>
    %cst_24 = arith.constant dense<0.000000e+00> : vector<16xf32>
    %59 = vector.multi_reduction <add>, %57, %cst_24 [0] : vector<8x16xf32> to vector<16xf32>
    %60 = vector.shape_cast %59 : vector<16xf32> to vector<1x16xf32>
    %cst_25 = arith.constant dense<0.000000e+00> : vector<16xf32>
    %61 = vector.multi_reduction <add>, %58, %cst_25 [0] : vector<8x16xf32> to vector<16xf32>
    %62 = vector.shape_cast %61 : vector<16xf32> to vector<1x16xf32>
    %63 = arith.mulf %60, %5 : vector<1x16xf32>
    %cst_26 = arith.constant dense<0.000000e+00> : vector<1xf32>
    %64 = vector.multi_reduction <add>, %63, %cst_26 [1] : vector<1x16xf32> to vector<1xf32>
    %65 = vector.shape_cast %64 : vector<1xf32> to vector<1x1xf32>
    %cst_27 = arith.constant dense<0.000000e+00> : vector<1xf32>
    %66 = vector.multi_reduction <add>, %62, %cst_27 [1] : vector<1x16xf32> to vector<1xf32>
    %67 = vector.shape_cast %66 : vector<1xf32> to vector<1x1xf32>
    %c0_28 = arith.constant 0 : index
    %c0_29 = arith.constant 0 : index
    %68 = vector.load %arg8[%c0_28, %c0_29] : memref<1x1xf32, #tpu.memory_space<vmem>>, vector<1x1xf32>
    %cst_30 = arith.constant 1.000000e+00 : f32
    %69 = vector.broadcast %cst_30 : f32 to vector<1x1xf32>
    %70 = arith.mulf %69, %65 : vector<1x1xf32>
    %cst_31 = arith.constant 5.000000e-01 : f32
    %71 = vector.broadcast %cst_31 : f32 to vector<1x1xf32>
    %72 = arith.mulf %71, %67 : vector<1x1xf32>
    %73 = arith.addf %70, %72 : vector<1x1xf32>
    %74 = arith.addf %68, %73 : vector<1x1xf32>
    %c0_32 = arith.constant 0 : index
    %c0_33 = arith.constant 0 : index
    %75 = vector.load %arg8[%c0_32, %c0_33] : memref<1x1xf32, #tpu.memory_space<vmem>>, vector<1x1xf32>
    tpu.vector_store %arg8[%c0_32, %c0_33], %74 {strides = array<i32>} : memref<1x1xf32, #tpu.memory_space<vmem>>, vector<1x1xf32>,
    %c0_i32_34 = arith.constant 0 : i32
    %76 = arith.cmpi eq, %arg1, %c0_i32_34 : i32
    %77 = arith.extui %76 : i1 to i32
    %c0_i32_35 = arith.constant 0 : i32
    %78 = arith.cmpi ne, %77, %c0_i32_35 : i32
    scf.if %78 {
      %c0_36 = arith.constant 0 : index
      %c0_37 = arith.constant 0 : index
      %79 = vector.load %arg8[%c0_36, %c0_37] : memref<1x1xf32, #tpu.memory_space<vmem>>, vector<1x1xf32>
      %80 = vector.shape_cast %79 : vector<1x1xf32> to vector<1x1x1xf32>
      %81 = vector.broadcast %80 : vector<1x1x1xf32> to vector<1x8x128xf32>
      %c0_38 = arith.constant 0 : index
      %c0_39 = arith.constant 0 : index
      %c0_40 = arith.constant 0 : index
      %82 = vector.load %arg7[%c0_38, %c0_39, %c0_40] : memref<1x8x128xf32, #tpu.memory_space<vmem>>, vector<1x8x128xf32>
      tpu.vector_store %arg7[%c0_38, %c0_39, %c0_40], %81 {strides = array<i32>} : memref<1x8x128xf32, #tpu.memory_space<vmem>>, vector<1x8x128xf32>,
    } else {
    }
    return
  }
  func.func @transform_0(%arg0: i32, %arg1: i32) -> (i32, i32) {
    %c1_i32 = arith.constant 1 : i32
    %0 = arith.muli %arg0, %c1_i32 : i32
    %1 = arith.addi %0, %arg1 : i32
    %c0_i32 = arith.constant 0 : i32
    %c0_i32_0 = arith.constant 0 : i32
    return %1, %c0_i32 : i32, i32
  }
  func.func @transform_1(%arg0: i32, %arg1: i32) -> (i32, i32) {
    %c1_i32 = arith.constant 1 : i32
    %0 = arith.muli %arg0, %c1_i32 : i32
    %1 = arith.addi %0, %arg1 : i32
    %c0_i32 = arith.constant 0 : i32
    %c0_i32_0 = arith.constant 0 : i32
    return %1, %c0_i32 : i32, i32
  }
  func.func @transform_2(%arg0: i32, %arg1: i32) -> (i32, i32) {
    %c0_i32 = arith.constant 0 : i32
    %c0_i32_0 = arith.constant 0 : i32
    %c0_i32_1 = arith.constant 0 : i32
    return %c0_i32, %c0_i32_0 : i32, i32
  }
  func.func @transform_3(%arg0: i32, %arg1: i32) -> (i32, i32) {
    %c0_i32 = arith.constant 0 : i32
    %c0_i32_0 = arith.constant 0 : i32
    %c0_i32_1 = arith.constant 0 : i32
    return %c0_i32, %c0_i32_0 : i32, i32
  }
  func.func @transform_4(%arg0: i32, %arg1: i32) -> (i32, i32, i32) {
    %c0_i32 = arith.constant 0 : i32
    %c0_i32_0 = arith.constant 0 : i32
    %c0_i32_1 = arith.constant 0 : i32
    %c0_i32_2 = arith.constant 0 : i32
    return %c0_i32, %c0_i32_0, %c0_i32_1 : i32, i32, i32
  }
  func.func @transform_5(%arg0: i32, %arg1: i32) -> (i32, i32, i32) {
    %c0_i32 = arith.constant 0 : i32
    %c0_i32_0 = arith.constant 0 : i32
    %c0_i32_1 = arith.constant 0 : i32
    return %arg0, %c0_i32, %c0_i32_0 : i32, i32, i32
  }
}

</mosaic_0001>

<llo_original>
// kernel: tpu_custom_call.1
$region0: #{tpu_custom_call.1}
  #allocation0 [shape = 'u32[]', space=smem, size = 0x4, offset = 0x4, fixed_abs, tag = 'smem constant byte address 0x4 - core index']
  #allocation1 [shape = 'u32[72,128]{1,0:T(1,128)}', space=vmem, size = 0x9000, scoped, tag = 'internal scratch']
  #allocation2 [shape = 'f32[1,1]{1,0:T(1,128)}', space=vmem, size = 0x200, scoped, tag = 'scratch operand']
  %s0 = inlined_call_operand.hbm [shape: f32[8,16], index: 0, kind: input, shape index: {}]
  %s1 = inlined_call_operand.hbm [shape: f32[8,16], index: 1, kind: input, shape index: {}]
  %s2 = inlined_call_operand.hbm [shape: f32[1,16], index: 2, kind: input, shape index: {}]
  %s3 = inlined_call_operand.vmem [shape: f32[2,16], index: 3, kind: input, shape index: {}]
  %s4 = inlined_call_operand.hbm [shape: bf16[2,16,16], index: 4, kind: input, shape index: {}]
  %s5 = inlined_call_operand.hbm [shape: f32[1,8,128], index: 5, kind: output, shape index: {}]
  %s6 = sld [smem:[#allocation0]]
  $region54: #{tpu_custom_call.1} parent=0
    _
  %s8 = ssub.s32 1, %s6
  %s9 = scalar_select 0, %s8, %s6
  $region1: #{tpu_custom_call.1} parent=0
    #allocation3 [shape = 'u8[4096]{0}', space=vmem, size = 0x1000, scoped, tag = 'input window, operand 0, single buffered']
    #allocation4 [shape = 's32[1]{0}', space=sflag, size = 0x4, scoped, tag = 'scoped memory for tpu_custom_call.1']
    #allocation5 [shape = 's32[1]{0}', space=sflag, size = 0x4, scoped, tag = 'scoped memory for tpu_custom_call.1']
    #allocation6 [shape = 'u8[4096]{0}', space=vmem, size = 0x1000, scoped, tag = 'input window, operand 1, single buffered']
    #allocation7 [shape = 's32[1]{0}', space=sflag, size = 0x4, scoped, tag = 'scoped memory for tpu_custom_call.1']
    #allocation8 [shape = 'u8[512]{0}', space=vmem, size = 0x400, scoped, tag = 'input window, operand 2, single buffered']
    #allocation9 [shape = 'u8[8192]{0}', space=vmem, size = 0x2000, scoped, tag = 'input window, operand 4, single buffered']
    #allocation10 [shape = 's32[1]{0}', space=sflag, size = 0x4, scoped, tag = 'scoped memory for tpu_custom_call.1']
    #allocation11 [shape = 'u8[4096]{0}', space=vmem, size = 0x1000, scoped, tag = 'output window, operand 0, single buffered']
    %10 = vsyncpa [#allocation4], 0
    %11 = vsyncpa [#allocation7], 0
    %12 = vsyncpa [#allocation10], 0
    %13 = vsyncpa [#allocation5], 0
    // Predicated region
    $region2: #{tpu_custom_call.1} parent=1 // pred_check
      _
    $region3: #{tpu_custom_call.1} parent=1 // pred_check_branch
      %15 = sbr.rel (0) target = $region5
    $region4: #{tpu_custom_call.1} parent=1 // pred_region
      %s16 = sadd.s32 0, 0
      %18 = vsyncadd [#allocation4], 0
      %s19 = smul.addr %s16, 8
      %s20 = scalar_lea.hbm %s0, %s19
      %s22 = sshll.u32 %s20, 4
      %s23 = int_to_ptr.hbm [resolvable:$true] %s22
      %s24 = sshll.u32 [#allocation3], 4
      %s25 = int_to_ptr.vmem [resolvable:$true] %s24
      %27 = dma.hbm_to_vmem [thread:$0]  %s23, 128, %s25, [#allocation4]
    $region5: #{tpu_custom_call.1} parent=1 // pred_fallthru
      _
    // Predicated region
    $region6: #{tpu_custom_call.1} parent=1 // pred_check
      _
    $region7: #{tpu_custom_call.1} parent=1 // pred_check_branch
      %29 = sbr.rel (0) target = $region9
    $region8: #{tpu_custom_call.1} parent=1 // pred_region
      %s30 = sadd.s32 0, 0
      %32 = vsyncadd [#allocation7], 0
      %s33 = smul.addr %s30, 8
      %s34 = scalar_lea.hbm %s1, %s33
      %s36 = sshll.u32 %s34, 4
      %s37 = int_to_ptr.hbm [resolvable:$true] %s36
      %s38 = sshll.u32 [#allocation6], 4
      %s39 = int_to_ptr.vmem [resolvable:$true] %s38
      %41 = dma.hbm_to_vmem [thread:$0]  %s37, 128, %s39, [#allocation7]
    $region9: #{tpu_custom_call.1} parent=1 // pred_fallthru
      _
    // Predicated region
    $region10: #{tpu_custom_call.1} parent=1 // pred_check
      _
    $region11: #{tpu_custom_call.1} parent=1 // pred_check_branch
      %43 = sbr.rel (0) target = $region13
    $region12: #{tpu_custom_call.1} parent=1 // pred_region
      %45 = vsyncadd [#allocation7], 0
      %s47 = sshll.u32 %s2, 4
      %s48 = int_to_ptr.hbm [resolvable:$true] %s47
      %s49 = sshll.u32 [#allocation8], 4
      %s50 = int_to_ptr.vmem [resolvable:$true] %s49
      %52 = dma.hbm_to_vmem [thread:$0]  %s48, 16, %s50, [#allocation7]
    $region13: #{tpu_custom_call.1} parent=1 // pred_fallthru
      _
    // Predicated region
    $region14: #{tpu_custom_call.1} parent=1 // pred_check
      _
    $region15: #{tpu_custom_call.1} parent=1 // pred_check_branch
      %54 = sbr.rel (0) target = $region17
    $region16: #{tpu_custom_call.1} parent=1 // pred_region
      _
    $region17: #{tpu_custom_call.1} parent=1 // pred_fallthru
      _
    // Predicated region
    $region18: #{tpu_custom_call.1} parent=1 // pred_check
      _
    $region19: #{tpu_custom_call.1} parent=1 // pred_check_branch
      %56 = sbr.rel (0) target = $region21
    $region20: #{tpu_custom_call.1} parent=1 // pred_region
      %58 = vsyncadd [#allocation10], 0
      %s59 = sshll.u32 %s4, 4
      %s60 = int_to_ptr.hbm [resolvable:$true] %s59
      %s61 = sshll.u32 [#allocation9], 4
      %s62 = int_to_ptr.vmem [resolvable:$true] %s61
      %67 = dma.hbm_to_vmem [thread:$0]  %s60, 256, %s62, [#allocation10], 64, 64, 4
    $region21: #{tpu_custom_call.1} parent=1 // pred_fallthru
      _
    // Predicated region
    $region22: #{tpu_custom_call.1} parent=1 // pred_check
      _
    $region23: #{tpu_custom_call.1} parent=1 // pred_check_branch
      %69 = sbr.rel (0) target = $region25
    $region24: #{tpu_custom_call.1} parent=1 // pred_region
      %71 = dma.done [#allocation4], 128
    $region25: #{tpu_custom_call.1} parent=1 // pred_fallthru
      _
    // Predicated region
    $region26: #{tpu_custom_call.1} parent=1 // pred_check
      _
    $region27: #{tpu_custom_call.1} parent=1 // pred_check_branch
      %73 = sbr.rel (0) target = $region29
    $region28: #{tpu_custom_call.1} parent=1 // pred_region
      %75 = dma.done [#allocation7], 128
    $region29: #{tpu_custom_call.1} parent=1 // pred_fallthru
      _
    // Predicated region
    $region30: #{tpu_custom_call.1} parent=1 // pred_check
      _
    $region31: #{tpu_custom_call.1} parent=1 // pred_check_branch
      %77 = sbr.rel (0) target = $region33
    $region32: #{tpu_custom_call.1} parent=1 // pred_region
      %79 = dma.done [#allocation7], 16
    $region33: #{tpu_custom_call.1} parent=1 // pred_fallthru
      _
    // Predicated region
    $region34: #{tpu_custom_call.1} parent=1 // pred_check
      _
    $region35: #{tpu_custom_call.1} parent=1 // pred_check_branch
      %81 = sbr.rel (0) target = $region37
    $region36: #{tpu_custom_call.1} parent=1 // pred_region
      %83 = dma.done [#allocation10], 256
    $region37: #{tpu_custom_call.1} parent=1 // pred_fallthru
      _
    %s84 = sadd.s32 0, 0
    %s85 = sadd.s32 0, 0
    %p86 = scmp.eq.s32.totalorder 0, 0
    // Predicated region
    $region38: #{tpu_custom_call.1} parent=1 // pred_check
      %p87 = pneg %p86
    $region39: #{tpu_custom_call.1} parent=1 // pred_check_branch
      %89 = sbr.rel (%p87) target = $region41
    $region40: #{tpu_custom_call.1} parent=1 // pred_region
      %vm90 = vcmask 0
      %91 = vst.msk [vmem:[#allocation2] sm:$0x1] %vm90, 0.0
    $region41: #{tpu_custom_call.1} parent=1 // pred_fallthru
      _
    %v92 = vld [vmem:[#allocation3] sm:$0xff]
    %v93 = vld [vmem:[#allocation6] sm:$0xff]
    %v94 = vld [vmem:[#allocation8] sm:$0x1]
    %s95 = sadd.s32 0, 0
    %s96 = smul.u32 %s95, 8
    %v97 = vlaneseq
    %v98 = vshrl.u32 %v97, 7
    %v99 = vstv %s96
    %v100 = vadd.s32 %v98, %v99
    %vm101 = vcmp.lt.s32.totalorder %v100, 2
    %v102 = vsel %vm101, 1, 0
    %v103 = vcvt.s32.f32 %v102
    %v104 = vand.u32 2147483647, %v92
    %v105 = vsub.f32 0.0, %v104
    %v106 = vmul.f32 %v105, 1.442695
    %v107 = vpow.pop %v106
    %v108 = vmax.f32 %v92, 0.0
    %v109 = vmul.f32 %v92, %v93
    %v110 = vsub.f32 %v108, %v109
    %v111 = vadd.f32 %v107, 1.0
    %v112 = vlog2.pop %v111
    %v113 = vmul.f32 %v112, 0.6931472
    %v114 = vmul.f32 -0.5, %v107
    %v115 = vadd.f32 %v114, 1.0
    %v116 = vmul.f32 %v115, %v107
    %v117 = vand.u32 2147483647, %v107
    %vm118 = vcmp.lt.f32.partialorder %v117, 0.0004427343
    %v119 = vsel %vm118, %v116, %v113
    %v120 = vadd.f32 %v110, %v119
    %v121 = vadd.f32 %v107, 1.0
    %v122 = vrcp.pop %v121
    %v123 = vmul.f32 %v121, %v122
    %v124 = vsub.f32 1.0, %v123
    %v125 = vmul.f32 %v122, %v124
    %v126 = vadd.f32 %v122, %v125
    %vm127 = vweird.f32 %v121
    %vm128 = vweird.f32 %v122
    %vm129 = vmor %vm127, %vm128
    %v130 = vsel %vm129, %v122, %v126
    %v131 = vand.u32 2147483647, %v121
    %vm132 = vcmp.eq.f32.partialorder %v131, 8.507059e+37
    %v133 = vand.u32 %v121, 2147483648
    %v134 = vor.u32 1.1754944e-38, %v133
    %v135 = vsel %vm132, %v134, %v130
    %v136 = vmul.f32 1.0, %v135
    %vm137 = vcmp.ge.f32.partialorder %v92, 0.0
    %v138 = vmul.f32 %v107, %v136
    %v139 = vsel %vm137, %v136, %v138
    %v140 = vld [vmem:[#allocation9] sm:$0xf]
    %v141 = vld [vmem:[#allocation9 + $0x4] sm:$0xf]
    %v142 = vunpack.c.l.bf16 %v140
    %v143 = vunpack.c.l.bf16 %v141
    %v144 = vld [vmem:[%s3] sm:$0x1]
    %vm145 = vcmask 130048
    %v147 = vsel %vm145, %v139, 0
    %149 = vmatpush.msra.mxu0 0.0
    %150 = vmatpush.msra.mxu0 0.0
    %151 = vmatpush.msra.mxu0 0.0
    %152 = vmatpush.msra.mxu0 0.0
    %153 = vmatpush.msra.mxu0 0.0
    %154 = vmatpush.msra.mxu0 0.0
    %155 = vmatpush.msra.mxu0 0.0
    %156 = vmatpush.msra.mxu0 0.0
    %157 = vmatpush.msra.mxu0 0.0
    %158 = vmatpush.msra.mxu0 0.0
    %159 = vmatpush.msra.mxu0 0.0
    %160 = vmatpush.msra.mxu0 0.0
    %161 = vmatpush.msra.mxu0 0.0
    %162 = vmatpush.msra.mxu0 0.0
    %163 = vmatpush.msra.mxu0 %v143
    %164 = vmatpush.msra.mxu0 %v142
    %v165 = vand.u32 %v147, 4294901760
    %v166 = vsub.f32 %v147, %v165
    %v167 = vand.u32 %v166, 4294901760
    %v168 = vsub.f32 %v166, %v167
    %v169 = vand.u32 %v168, 4294901760
    %170 = vmatmul.f32.gmra.mxu0 %v169
    %v171 = vpop.f32.mrf.mxu0
    %v172 = vadd.f32 0.0, %v171
    %173 = vdwg.mxu0
    %174 = vmatpush.msra.mxu0 0.0
    %175 = vmatpush.msra.mxu0 0.0
    %176 = vmatpush.msra.mxu0 0.0
    %177 = vmatpush.msra.mxu0 0.0
    %178 = vmatpush.msra.mxu0 0.0
    %179 = vmatpush.msra.mxu0 0.0
    %180 = vmatpush.msra.mxu0 0.0
    %181 = vmatpush.msra.mxu0 0.0
    %182 = vmatpush.msra.mxu0 0.0
    %183 = vmatpush.msra.mxu0 0.0
    %184 = vmatpush.msra.mxu0 0.0
    %185 = vmatpush.msra.mxu0 0.0
    %186 = vmatpush.msra.mxu0 0.0
    %187 = vmatpush.msra.mxu0 0.0
    %v188 = vsub.f32 %v143, %v143
    %v189 = vand.u32 %v188, 4294901760
    %v190 = vsub.f32 %v188, %v189
    %v191 = vand.u32 %v190, 4294901760
    %192 = vmatpush.msra.mxu0 %v191
    %v193 = vsub.f32 %v142, %v142
    %v194 = vand.u32 %v193, 4294901760
    %v195 = vsub.f32 %v193, %v194
    %v196 = vand.u32 %v195, 4294901760
    %197 = vmatpush.msra.mxu0 %v196
    %v198 = vand.u32 %v147, 4294901760
    %199 = vmatmul.f32.gmra.mxu0 %v198
    %v200 = vpop.f32.mrf.mxu0
    %v201 = vadd.f32 %v172, %v200
    %202 = vdwg.mxu0
    %203 = vmatpush.msra.mxu0 0.0
    %204 = vmatpush.msra.mxu0 0.0
    %205 = vmatpush.msra.mxu0 0.0
    %206 = vmatpush.msra.mxu0 0.0
    %207 = vmatpush.msra.mxu0 0.0
    %208 = vmatpush.msra.mxu0 0.0
    %209 = vmatpush.msra.mxu0 0.0
    %210 = vmatpush.msra.mxu0 0.0
    %211 = vmatpush.msra.mxu0 0.0
    %212 = vmatpush.msra.mxu0 0.0
    %213 = vmatpush.msra.mxu0 0.0
    %214 = vmatpush.msra.mxu0 0.0
    %215 = vmatpush.msra.mxu0 0.0
    %216 = vmatpush.msra.mxu0 0.0
    %v217 = vsub.f32 %v143, %v143
    %218 = vmatpush.msra.mxu0 %v217
    %v219 = vsub.f32 %v142, %v142
    %220 = vmatpush.msra.mxu0 %v219
    %v221 = vand.u32 %v147, 4294901760
    %v222 = vsub.f32 %v147, %v221
    %223 = vmatmul.f32.gmra.mxu0 %v222
    %v224 = vpop.f32.mrf.mxu0
    %v225 = vadd.f32 %v201, %v224
    %226 = vdwg.mxu0
    %227 = vmatpush.msra.mxu0 0.0
    %228 = vmatpush.msra.mxu0 0.0
    %229 = vmatpush.msra.mxu0 0.0
    %230 = vmatpush.msra.mxu0 0.0
    %231 = vmatpush.msra.mxu0 0.0
    %232 = vmatpush.msra.mxu0 0.0
    %233 = vmatpush.msra.mxu0 0.0
    %234 = vmatpush.msra.mxu0 0.0
    %235 = vmatpush.msra.mxu0 0.0
    %236 = vmatpush.msra.mxu0 0.0
    %237 = vmatpush.msra.mxu0 0.0
    %238 = vmatpush.msra.mxu0 0.0
    %239 = vmatpush.msra.mxu0 0.0
    %240 = vmatpush.msra.mxu0 0.0
    %241 = vmatpush.msra.mxu0 %v143
    %242 = vmatpush.msra.mxu0 %v142
    %v243 = vand.u32 %v147, 4294901760
    %v244 = vsub.f32 %v147, %v243
    %v245 = vand.u32 %v244, 4294901760
    %246 = vmatmul.f32.gmra.mxu0 %v245
    %v247 = vpop.f32.mrf.mxu0
    %v248 = vadd.f32 %v225, %v247
    %249 = vdwg.mxu0
    %250 = vmatpush.msra.mxu0 0.0
    %251 = vmatpush.msra.mxu0 0.0
    %252 = vmatpush.msra.mxu0 0.0
    %253 = vmatpush.msra.mxu0 0.0
    %254 = vmatpush.msra.mxu0 0.0
    %255 = vmatpush.msra.mxu0 0.0
    %256 = vmatpush.msra.mxu0 0.0
    %257 = vmatpush.msra.mxu0 0.0
    %258 = vmatpush.msra.mxu0 0.0
    %259 = vmatpush.msra.mxu0 0.0
    %260 = vmatpush.msra.mxu0 0.0
    %261 = vmatpush.msra.mxu0 0.0
    %262 = vmatpush.msra.mxu0 0.0
    %263 = vmatpush.msra.mxu0 0.0
    %v264 = vsub.f32 %v143, %v143
    %v265 = vand.u32 %v264, 4294901760
    %266 = vmatpush.msra.mxu0 %v265
    %v267 = vsub.f32 %v142, %v142
    %v268 = vand.u32 %v267, 4294901760
    %269 = vmatpush.msra.mxu0 %v268
    %v270 = vand.u32 %v147, 4294901760
    %271 = vmatmul.f32.gmra.mxu0 %v270
    %v272 = vpop.f32.mrf.mxu0
    %v273 = vadd.f32 %v248, %v272
    %274 = vdwg.mxu0
    %275 = vmatpush.msra.mxu0 0.0
    %276 = vmatpush.msra.mxu0 0.0
    %277 = vmatpush.msra.mxu0 0.0
    %278 = vmatpush.msra.mxu0 0.0
    %279 = vmatpush.msra.mxu0 0.0
    %280 = vmatpush.msra.mxu0 0.0
    %281 = vmatpush.msra.mxu0 0.0
    %282 = vmatpush.msra.mxu0 0.0
    %283 = vmatpush.msra.mxu0 0.0
    %284 = vmatpush.msra.mxu0 0.0
    %285 = vmatpush.msra.mxu0 0.0
    %286 = vmatpush.msra.mxu0 0.0
    %287 = vmatpush.msra.mxu0 0.0
    %288 = vmatpush.msra.mxu0 0.0
    %289 = vmatpush.msra.mxu0 %v143
    %290 = vmatpush.msra.mxu0 %v142
    %v291 = vand.u32 %v147, 4294901760
    %292 = vmatmul.f32.gmra.mxu0 %v291
    %v293 = vpop.f32.mrf.mxu0
    %v294 = vadd.f32 %v273, %v293
    %295 = vdwg.mxu0
    %v296 = vsub.f32 %v139, %v294
    %v297 = vmax.f32 %v296, 0.0
    %v298 = vperm.slane %v144, 0
    %v299 = vmul.f32 %v298, %v297
    %v300 = vadd.f32 %v299, 0.0
    %s301 = scalar_lea.vmem [#allocation9], 8
    %v302 = vld [vmem:[%s301] sm:$0xf]
    %v303 = vld [vmem:[%s301 + $0x4] sm:$0xf]
    %v304 = vunpack.c.l.bf16 %v302
    %v305 = vunpack.c.l.bf16 %v303
    %v306 = vld [vmem:[%s3 + $0x1] sm:$0x1]
    %307 = vmatpush.msra.mxu0 0.0
    %308 = vmatpush.msra.mxu0 0.0
    %309 = vmatpush.msra.mxu0 0.0
    %310 = vmatpush.msra.mxu0 0.0
    %311 = vmatpush.msra.mxu0 0.0
    %312 = vmatpush.msra.mxu0 0.0
    %313 = vmatpush.msra.mxu0 0.0
    %314 = vmatpush.msra.mxu0 0.0
    %315 = vmatpush.msra.mxu0 0.0
    %316 = vmatpush.msra.mxu0 0.0
    %317 = vmatpush.msra.mxu0 0.0
    %318 = vmatpush.msra.mxu0 0.0
    %319 = vmatpush.msra.mxu0 0.0
    %320 = vmatpush.msra.mxu0 0.0
    %321 = vmatpush.msra.mxu0 %v305
    %322 = vmatpush.msra.mxu0 %v304
    %v323 = vand.u32 %v147, 4294901760
    %v324 = vsub.f32 %v147, %v323
    %v325 = vand.u32 %v324, 4294901760
    %v326 = vsub.f32 %v324, %v325
    %v327 = vand.u32 %v326, 4294901760
    %328 = vmatmul.f32.gmra.mxu0 %v327
    %v329 = vpop.f32.mrf.mxu0
    %v330 = vadd.f32 0.0, %v329
    %331 = vdwg.mxu0
    %332 = vmatpush.msra.mxu0 0.0
    %333 = vmatpush.msra.mxu0 0.0
    %334 = vmatpush.msra.mxu0 0.0
    %335 = vmatpush.msra.mxu0 0.0
    %336 = vmatpush.msra.mxu0 0.0
    %337 = vmatpush.msra.mxu0 0.0
    %338 = vmatpush.msra.mxu0 0.0
    %339 = vmatpush.msra.mxu0 0.0
    %340 = vmatpush.msra.mxu0 0.0
    %341 = vmatpush.msra.mxu0 0.0
    %342 = vmatpush.msra.mxu0 0.0
    %343 = vmatpush.msra.mxu0 0.0
    %344 = vmatpush.msra.mxu0 0.0
    %345 = vmatpush.msra.mxu0 0.0
    %v346 = vsub.f32 %v305, %v305
    %v347 = vand.u32 %v346, 4294901760
    %v348 = vsub.f32 %v346, %v347
    %v349 = vand.u32 %v348, 4294901760
    %350 = vmatpush.msra.mxu0 %v349
    %v351 = vsub.f32 %v304, %v304
    %v352 = vand.u32 %v351, 4294901760
    %v353 = vsub.f32 %v351, %v352
    %v354 = vand.u32 %v353, 4294901760
    %355 = vmatpush.msra.mxu0 %v354
    %v356 = vand.u32 %v147, 4294901760
    %357 = vmatmul.f32.gmra.mxu0 %v356
    %v358 = vpop.f32.mrf.mxu0
    %v359 = vadd.f32 %v330, %v358
    %360 = vdwg.mxu0
    %361 = vmatpush.msra.mxu0 0.0
    %362 = vmatpush.msra.mxu0 0.0
    %363 = vmatpush.msra.mxu0 0.0
    %364 = vmatpush.msra.mxu0 0.0
    %365 = vmatpush.msra.mxu0 0.0
    %366 = vmatpush.msra.mxu0 0.0
    %367 = vmatpush.msra.mxu0 0.0
    %368 = vmatpush.msra.mxu0 0.0
    %369 = vmatpush.msra.mxu0 0.0
    %370 = vmatpush.msra.mxu0 0.0
    %371 = vmatpush.msra.mxu0 0.0
    %372 = vmatpush.msra.mxu0 0.0
    %373 = vmatpush.msra.mxu0 0.0
    %374 = vmatpush.msra.mxu0 0.0
    %v375 = vsub.f32 %v305, %v305
    %376 = vmatpush.msra.mxu0 %v375
    %v377 = vsub.f32 %v304, %v304
    %378 = vmatpush.msra.mxu0 %v377
    %v379 = vand.u32 %v147, 4294901760
    %v380 = vsub.f32 %v147, %v379
    %381 = vmatmul.f32.gmra.mxu0 %v380
    %v382 = vpop.f32.mrf.mxu0
    %v383 = vadd.f32 %v359, %v382
    %384 = vdwg.mxu0
    %385 = vmatpush.msra.mxu0 0.0
    %386 = vmatpush.msra.mxu0 0.0
    %387 = vmatpush.msra.mxu0 0.0
    %388 = vmatpush.msra.mxu0 0.0
    %389 = vmatpush.msra.mxu0 0.0
    %390 = vmatpush.msra.mxu0 0.0
    %391 = vmatpush.msra.mxu0 0.0
    %392 = vmatpush.msra.mxu0 0.0
    %393 = vmatpush.msra.mxu0 0.0
    %394 = vmatpush.msra.mxu0 0.0
    %395 = vmatpush.msra.mxu0 0.0
    %396 = vmatpush.msra.mxu0 0.0
    %397 = vmatpush.msra.mxu0 0.0
    %398 = vmatpush.msra.mxu0 0.0
    %399 = vmatpush.msra.mxu0 %v305
    %400 = vmatpush.msra.mxu0 %v304
    %v401 = vand.u32 %v147, 4294901760
    %v402 = vsub.f32 %v147, %v401
    %v403 = vand.u32 %v402, 4294901760
    %404 = vmatmul.f32.gmra.mxu0 %v403
    %v405 = vpop.f32.mrf.mxu0
    %v406 = vadd.f32 %v383, %v405
    %407 = vdwg.mxu0
    %408 = vmatpush.msra.mxu0 0.0
    %409 = vmatpush.msra.mxu0 0.0
    %410 = vmatpush.msra.mxu0 0.0
    %411 = vmatpush.msra.mxu0 0.0
    %412 = vmatpush.msra.mxu0 0.0
    %413 = vmatpush.msra.mxu0 0.0
    %414 = vmatpush.msra.mxu0 0.0
    %415 = vmatpush.msra.mxu0 0.0
    %416 = vmatpush.msra.mxu0 0.0
    %417 = vmatpush.msra.mxu0 0.0
    %418 = vmatpush.msra.mxu0 0.0
    %419 = vmatpush.msra.mxu0 0.0
    %420 = vmatpush.msra.mxu0 0.0
    %421 = vmatpush.msra.mxu0 0.0
    %v422 = vsub.f32 %v305, %v305
    %v423 = vand.u32 %v422, 4294901760
    %424 = vmatpush.msra.mxu0 %v423
    %v425 = vsub.f32 %v304, %v304
    %v426 = vand.u32 %v425, 4294901760
    %427 = vmatpush.msra.mxu0 %v426
    %v428 = vand.u32 %v147, 4294901760
    %429 = vmatmul.f32.gmra.mxu0 %v428
    %v430 = vpop.f32.mrf.mxu0
    %v431 = vadd.f32 %v406, %v430
    %432 = vdwg.mxu0
    %433 = vmatpush.msra.mxu0 0.0
    %434 = vmatpush.msra.mxu0 0.0
    %435 = vmatpush.msra.mxu0 0.0
    %436 = vmatpush.msra.mxu0 0.0
    %437 = vmatpush.msra.mxu0 0.0
    %438 = vmatpush.msra.mxu0 0.0
    %439 = vmatpush.msra.mxu0 0.0
    %440 = vmatpush.msra.mxu0 0.0
    %441 = vmatpush.msra.mxu0 0.0
    %442 = vmatpush.msra.mxu0 0.0
    %443 = vmatpush.msra.mxu0 0.0
    %444 = vmatpush.msra.mxu0 0.0
    %445 = vmatpush.msra.mxu0 0.0
    %446 = vmatpush.msra.mxu0 0.0
    %447 = vmatpush.msra.mxu0 %v305
    %448 = vmatpush.msra.mxu0 %v304
    %v449 = vand.u32 %v147, 4294901760
    %450 = vmatmul.f32.gmra.mxu0 %v449
    %v451 = vpop.f32.mrf.mxu0
    %v452 = vadd.f32 %v431, %v451
    %453 = vdwg.mxu0
    %v454 = vsub.f32 %v139, %v452
    %v455 = vmax.f32 %v454, 0.0
    %v456 = vperm.slane %v306, 0
    %v457 = vmul.f32 %v456, %v455
    %v458 = vadd.f32 %v300, %v457
    %v459 = vmul.f32 %v120, %v103
    %v460 = vmul.f32 %v458, %v103
    %v461 = vsel %vm145, %v459, 0.0
    %v462 = vrot.slane %v461, 4
    %v463 = vadd.f32 %v461, %v462
    %v464 = vrot.slane %v463, 2
    %v465 = vadd.f32 %v463, %v464
    %v466 = vrot.slane %v465, 1
    %v467 = vadd.f32 %v465, %v466
    %v468 = vsel %vm145, %v460, 0.0
    %v469 = vrot.slane %v468, 4
    %v470 = vadd.f32 %v468, %v469
    %v471 = vrot.slane %v470, 2
    %v472 = vadd.f32 %v470, %v471
    %v473 = vrot.slane %v472, 1
    %v474 = vadd.f32 %v472, %v473
    %v475 = vmul.f32 %v467, %v94
    %vm476 = vcmask 122880
    %v477 = vsel %vm476, %v475, 0.0
    %478 = vadd.xlane.f32.xlu0 %v477
    %v479 = vpop.xlane.xlu0 %478
    %v480 = vsel %vm145, %v474, 0.0
    %481 = vadd.xlane.f32.xlu0 %v480
    %v482 = vpop.xlane.xlu0 %481
    %v483 = vld [vmem:[#allocation2] sm:$0x1]
    %v484 = vmul.f32 %v482, 0.5
    %v485 = vadd.f32 %v479, %v484
    %v486 = vadd.f32 %v483, %v485
    %vm487 = vcmask 0
    %488 = vst.msk [vmem:[#allocation2] sm:$0x1] %vm487, %v486
    // Predicated region
    $region42: #{tpu_custom_call.1} parent=1 // pred_check
      %p489 = pneg %p86
    $region43: #{tpu_custom_call.1} parent=1 // pred_check_branch
      %491 = sbr.rel (%p489) target = $region45
    $region44: #{tpu_custom_call.1} parent=1 // pred_region
      %v492 = vld [vmem:[#allocation2] sm:$0x1]
      %v494 = vperm.slane %v492, 0
      %495 = vset.pattern.permute.xlu0 0
      %496 = vperm.xlu0 %495, %v494
      %v497 = vpop.permute.xlu0 %496
      %499 = vst [vmem:[#allocation11] sm:$0xff] %v497
    $region45: #{tpu_custom_call.1} parent=1 // pred_fallthru
      _
    // Predicated region
    $region46: #{tpu_custom_call.1} parent=1 // pred_check
      _
    $region47: #{tpu_custom_call.1} parent=1 // pred_check_branch
      %501 = sbr.rel (0) target = $region49
    $region48: #{tpu_custom_call.1} parent=1 // pred_region
      %503 = vsyncadd [#allocation5], 0
      %s505 = sshll.u32 [#allocation11], 4
      %s506 = int_to_ptr.vmem [resolvable:$true] %s505
      %s507 = sshll.u32 %s5, 4
      %s508 = int_to_ptr.hbm [resolvable:$true] %s507
      %510 = dma.vmem_to_hbm [thread:$0]  %s506, 128, %s508, [#allocation5]
    $region49: #{tpu_custom_call.1} parent=1 // pred_fallthru
      _
    // Predicated region
    $region50: #{tpu_custom_call.1} parent=1 // pred_check
      _
    $region51: #{tpu_custom_call.1} parent=1 // pred_check_branch
      %512 = sbr.rel (0) target = $region53
    $region52: #{tpu_custom_call.1} parent=1 // pred_region
      %514 = dma.done [#allocation5], 128
    $region53: #{tpu_custom_call.1} parent=1 // pred_fallthru
      _
    %515 = vsyncpa [#allocation4], 1
    %516 = vsyncpa [#allocation7], 1
    %517 = vsyncpa [#allocation10], 1
    %518 = vsyncpa [#allocation5], 1

</llo_original>
